<compile_context>
chip_gen: v7x
topology: tpu7x:2x2x1
jax: 0.10.0
libtpu: 0.0.40
codegen_flags: <defaults>
</compile_context>

<pallas_src>
import jax
import jax.numpy as jnp
from jax.experimental import pallas as pl
from jax.experimental.pallas import tpu as pltpu


def mynet_kernel(w_ref, b_ref, x_ref, o_ref):
    """out[0, t] = sum_f x[f, t] * w[f] + b[0]   (the /4 is pre-folded into w, b).

    w_ref: SMEM (4,) f32   -- weight row * 0.25
    b_ref: SMEM (1,) f32   -- bias * 0.25
    x_ref: VMEM (4, T) f32 -- lane-dense input tile (batch on lanes)
    o_ref: VMEM (1, T) f32 -- lane-dense output tile
    """
    x = x_ref[...]  # (4, T)
    # Pure VPU: four scalar-broadcast multiply-adds over (1, T) slabs, no MXU.
    y = (x[0:1, :] * w_ref[0]
         + x[1:2, :] * w_ref[1]
         + x[2:3, :] * w_ref[2]
         + x[3:4, :] * w_ref[3]
         + b_ref[0])
    o_ref[...] = y.astype(o_ref.dtype)


def mynet_forward(x, weight, bias, *, tile=2048):
    """MyNet forward: (x @ weight.T + bias) / 4 for weight (1, 4), bias (1,)."""
    B, F = x.shape
    assert F == 4 and weight.shape == (1, 4) and bias.shape == (1,)

    # Keep the tile a multiple of 128 but don't over-pad tiny batches.
    tile = min(tile, max(128, int(pl.next_power_of_2(B))))
    n_tiles = pl.cdiv(B, tile)
    b_pad = n_tiles * tile

    # Lane-dense layout: batch on the last (lane) dimension.
    x_t = jnp.transpose(x.astype(jnp.float32))            # (4, B)
    if b_pad != B:
        x_t = jnp.pad(x_t, ((0, 0), (0, b_pad - B)))       # (4, b_pad)

    # Fold MyMean's /4 into the linear parameters.
    w_s = (weight.reshape(F) * 0.25).astype(jnp.float32)   # (4,)  SMEM scalars
    b_s = (bias.reshape(1) * 0.25).astype(jnp.float32)     # (1,)  SMEM scalar

    out_pad = pl.pallas_call(
        mynet_kernel,
        out_shape=jax.ShapeDtypeStruct((1, b_pad), jnp.float32),
        grid=(n_tiles,),
        in_specs=[
            pl.BlockSpec(memory_space=pltpu.MemorySpace.SMEM),  # weight scalars
            pl.BlockSpec(memory_space=pltpu.MemorySpace.SMEM),  # bias scalar
            pl.BlockSpec((4, tile), lambda i: (0, i)),          # x tile (4, T)
        ],
        out_specs=pl.BlockSpec((1, tile), lambda i: (0, i)),    # out tile (1, T)
        compiler_params=pltpu.CompilerParams(
            dimension_semantics=("parallel",),   # shard batch tiles across TCs (v7x)
            vmem_limit_bytes=32 * 1024 * 1024,
        ),
    )(w_s, b_s, x_t)

    # Back to PyTorch layout (B, 1), dropping batch padding.
    return out_pad[:, :B].T.astype(x.dtype)


if __name__ == "__main__":
    key = jax.random.PRNGKey(0)
    IN, OUT = 4, 1

    # Deterministic parameters matching MyNet.weight_init()
    weight = jnp.full((OUT, IN), 8.0, dtype=jnp.float32)   # f1.weight.data.fill_(8.0)
    bias = jnp.full((OUT,), 2.0, dtype=jnp.float32)        # f1.bias.data.fill_(2.0)

    def ref_forward(xv):
        return (xv @ weight.T + bias) / 4.0

    # Small batch, as implied by Linear(4, 1).
    x_small = jax.random.normal(key, (2, IN), dtype=jnp.float32)
    out_small = jax.block_until_ready(mynet_forward(x_small, weight, bias))
    assert out_small.shape == (2, OUT)
    assert jnp.allclose(out_small, ref_forward(x_small), atol=1e-5, rtol=1e-5)

    # Larger, non-tile-aligned batch to exercise the multi-tile grid + padding path.
    x_big = jax.random.normal(jax.random.PRNGKey(1), (3000, IN), dtype=jnp.float32)
    out_big = jax.block_until_ready(mynet_forward(x_big, weight, bias))
    assert out_big.shape == (3000, OUT)
    assert jnp.allclose(out_big, ref_forward(x_big), atol=1e-5, rtol=1e-5)

    # TODO(synk): the backward gradient hook (my_hook) is autograd machinery, not
    # part of the forward pass, so it is intentionally not translated.
    print("KERNEL_OK")
</pallas_src>

<mosaic_0001>
module attributes {stable_mosaic.version = 11 : i64} {
  func.func @mynet_kernel(%arg0: i32, %arg1: memref<4xf32, #tpu.memory_space<smem>>, %arg2: memref<1xf32, #tpu.memory_space<smem>>, %arg3: memref<4x128xf32, #tpu.memory_space<vmem>>, %arg4: memref<1x128xf32, #tpu.memory_space<vmem>>) attributes {dimension_semantics = [#tpu.dimension_semantics<parallel>], iteration_bounds = array<i64: 1>, scalar_prefetch = 0 : i64, scratch_operands = 0 : i64, tpu.core_type = #tpu.core_type<tc>, window_params = [{transform_indices = @transform_0, window_bounds = array<i64: 4>}, {transform_indices = @transform_1, window_bounds = array<i64: 1>}, {transform_indices = @transform_2, window_bounds = array<i64: 4, 128>}, {transform_indices = @transform_3, window_bounds = array<i64: 1, 128>}]} {
    %c0 = arith.constant 0 : index
    %c0_0 = arith.constant 0 : index
    %0 = vector.load %arg3[%c0, %c0_0] : memref<4x128xf32, #tpu.memory_space<vmem>>, vector<4x128xf32>
    %1 = vector.extract_strided_slice %0 {offsets = [0, 0], sizes = [1, 128], strides = [1, 1]} : vector<4x128xf32> to vector<1x128xf32>
    %c0_1 = arith.constant 0 : index
    %2 = memref.load %arg1[%c0_1] : memref<4xf32, #tpu.memory_space<smem>>
    %3 = vector.broadcast %2 : f32 to vector<1x128xf32>
    %4 = arith.mulf %1, %3 : vector<1x128xf32>
    %5 = vector.extract_strided_slice %0 {offsets = [1, 0], sizes = [1, 128], strides = [1, 1]} : vector<4x128xf32> to vector<1x128xf32>
    %c1 = arith.constant 1 : index
    %6 = memref.load %arg1[%c1] : memref<4xf32, #tpu.memory_space<smem>>
    %7 = vector.broadcast %6 : f32 to vector<1x128xf32>
    %8 = arith.mulf %5, %7 : vector<1x128xf32>
    %9 = arith.addf %4, %8 : vector<1x128xf32>
    %10 = vector.extract_strided_slice %0 {offsets = [2, 0], sizes = [1, 128], strides = [1, 1]} : vector<4x128xf32> to vector<1x128xf32>
    %c2 = arith.constant 2 : index
    %11 = memref.load %arg1[%c2] : memref<4xf32, #tpu.memory_space<smem>>
    %12 = vector.broadcast %11 : f32 to vector<1x128xf32>
    %13 = arith.mulf %10, %12 : vector<1x128xf32>
    %14 = arith.addf %9, %13 : vector<1x128xf32>
    %15 = vector.extract_strided_slice %0 {offsets = [3, 0], sizes = [1, 128], strides = [1, 1]} : vector<4x128xf32> to vector<1x128xf32>
    %c3 = arith.constant 3 : index
    %16 = memref.load %arg1[%c3] : memref<4xf32, #tpu.memory_space<smem>>
    %17 = vector.broadcast %16 : f32 to vector<1x128xf32>
    %18 = arith.mulf %15, %17 : vector<1x128xf32>
    %19 = arith.addf %14, %18 : vector<1x128xf32>
    %c0_2 = arith.constant 0 : index
    %20 = memref.load %arg2[%c0_2] : memref<1xf32, #tpu.memory_space<smem>>
    %21 = vector.broadcast %20 : f32 to vector<1x128xf32>
    %22 = arith.addf %19, %21 : vector<1x128xf32>
    %c0_3 = arith.constant 0 : index
    %c0_4 = arith.constant 0 : index
    %23 = vector.load %arg4[%c0_3, %c0_4] : memref<1x128xf32, #tpu.memory_space<vmem>>, vector<1x128xf32>
    tpu.vector_store %arg4[%c0_3, %c0_4], %22 {strides = array<i32>} : memref<1x128xf32, #tpu.memory_space<vmem>>, vector<1x128xf32>,
    return
  }
  func.func @transform_0(%arg0: i32) -> i32 {
    %c0_i32 = arith.constant 0 : i32
    %c0_i32_0 = arith.constant 0 : i32
    return %c0_i32 : i32
  }
  func.func @transform_1(%arg0: i32) -> i32 {
    %c0_i32 = arith.constant 0 : i32
    %c0_i32_0 = arith.constant 0 : i32
    return %c0_i32 : i32
  }
  func.func @transform_2(%arg0: i32) -> (i32, i32) {
    %c0_i32 = arith.constant 0 : i32
    %c0_i32_0 = arith.constant 0 : i32
    return %c0_i32, %arg0 : i32, i32
  }
  func.func @transform_3(%arg0: i32) -> (i32, i32) {
    %c0_i32 = arith.constant 0 : i32
    %c0_i32_0 = arith.constant 0 : i32
    return %c0_i32, %arg0 : i32, i32
  }
}

</mosaic_0001>

<llo_original>
// kernel: tpu_custom_call.1
$region0: #{tpu_custom_call.1}
  #allocation0 [shape = 'u32[]', space=smem, size = 0x4, offset = 0x4, fixed_abs, tag = 'smem constant byte address 0x4 - core index']
  #allocation1 [shape = 'u32[144,128]{1,0:T(1,128)}', space=vmem, size = 0x12000, scoped, tag = 'internal scratch']
  #allocation2 [shape = 'f32[1]{0:T(128)S(6)}', space=smem, size = 0x200, scoped, tag = 'scoped memory for tpu_custom_call.1']
  %s0 = inlined_call_operand.vmem [shape: f32[4], index: 0, kind: input, shape index: {}]
  %s1 = inlined_call_operand.<no memory space> [shape: f32[1], index: 1, kind: input, shape index: {}]
  %s2 = inlined_call_operand.vmem [shape: f32[4,128], index: 2, kind: input, shape index: {}]
  %s3 = inlined_call_operand.hbm [shape: f32[1,128], index: 3, kind: output, shape index: {}]
  %s4 = sld [smem:[#allocation0]]
  $region26: #{tpu_custom_call.1} parent=0
    _
  %s6 = ssub.s32 1, %s4
  %s7 = scalar_select 0, %s6, %s4
  %8 = sst [smem:[#allocation2]] %s1
  $region1: #{tpu_custom_call.1} parent=0
    #allocation3 [shape = 'u8[512]{0}', space=smem, size = 0x200, scoped, tag = 'input window, operand 0, single buffered']
    #allocation4 [shape = 's32[1]{0}', space=sflag, size = 0x4, scoped, tag = 'scoped memory for tpu_custom_call.1']
    #allocation5 [shape = 's32[1]{0}', space=sflag, size = 0x4, scoped, tag = 'scoped memory for tpu_custom_call.1']
    #allocation6 [shape = 'u8[512]{0}', space=vmem, size = 0x400, scoped, tag = 'output window, operand 0, single buffered']
    %9 = vsyncpa [#allocation5], 0
    %10 = vsyncpa [#allocation4], 0
    // Predicated region
    $region2: #{tpu_custom_call.1} parent=1 // pred_check
      _
    $region3: #{tpu_custom_call.1} parent=1 // pred_check_branch
      %12 = sbr.rel (0) target = $region5
    $region4: #{tpu_custom_call.1} parent=1 // pred_region
      %s14 = ssub.s32 16, 16
      %15 = vsyncadd [#allocation5], %s14
      %s17 = sshll.u32 %s0, 4
      %s18 = int_to_ptr.vmem [resolvable:$true] %s17
      %20 = dma.vmem_to_smem %s18, 16, [#allocation3], [#allocation5]
    $region5: #{tpu_custom_call.1} parent=1 // pred_fallthru
      _
    // Predicated region
    $region6: #{tpu_custom_call.1} parent=1 // pred_check
      _
    $region7: #{tpu_custom_call.1} parent=1 // pred_check_branch
      %22 = sbr.rel (0) target = $region9
    $region8: #{tpu_custom_call.1} parent=1 // pred_region
      _
    $region9: #{tpu_custom_call.1} parent=1 // pred_fallthru
      _
    // Predicated region
    $region10: #{tpu_custom_call.1} parent=1 // pred_check
      _
    $region11: #{tpu_custom_call.1} parent=1 // pred_check_branch
      %24 = sbr.rel (0) target = $region13
    $region12: #{tpu_custom_call.1} parent=1 // pred_region
      _
    $region13: #{tpu_custom_call.1} parent=1 // pred_fallthru
      _
    // Predicated region
    $region14: #{tpu_custom_call.1} parent=1 // pred_check
      _
    $region15: #{tpu_custom_call.1} parent=1 // pred_check_branch
      %26 = sbr.rel (0) target = $region17
    $region16: #{tpu_custom_call.1} parent=1 // pred_region
      %27 = dma.done [#allocation5], 16
    $region17: #{tpu_custom_call.1} parent=1 // pred_fallthru
      _
    %28 = sfence
    %v29 = vld [vmem:[%s2] sm:$0xf]
    %s30 = sld [smem:[#allocation3]]
    %v31 = vstv %s30
    %v32 = vmul.f32 %v29, %v31
    %s33 = sld [smem:[#allocation3 + $0x1]]
    %v34 = vstv %s33
    %v35 = vmul.f32 %v29, %v34
    %v37 = vrot.slane %v35, 1
    %v39 = vadd.f32 %v32, %v37
    %s40 = sld [smem:[#allocation3 + $0x2]]
    %v41 = vstv %s40
    %v42 = vmul.f32 %v29, %v41
    %v44 = vrot.slane %v42, 2
    %v46 = vadd.f32 %v39, %v44
    %s47 = sld [smem:[#allocation3 + $0x3]]
    %v48 = vstv %s47
    %v49 = vmul.f32 %v29, %v48
    %v51 = vrot.slane %v49, 3
    %v53 = vadd.f32 %v46, %v51
    %s54 = sld [smem:[#allocation2]]
    %v55 = vstv %s54
    %v56 = vadd.f32 %v53, %v55
    %57 = vst [vmem:[#allocation6] sm:$0x1] %v56
    // Predicated region
    $region18: #{tpu_custom_call.1} parent=1 // pred_check
      _
    $region19: #{tpu_custom_call.1} parent=1 // pred_check_branch
      %59 = sbr.rel (0) target = $region21
    $region20: #{tpu_custom_call.1} parent=1 // pred_region
      %s61 = ssub.s32 16, 16
      %62 = vsyncadd [#allocation4], %s61
      %s64 = sshll.u32 [#allocation6], 4
      %s65 = int_to_ptr.vmem [resolvable:$true] %s64
      %67 = dma.vmem_to_hbm [thread:$0]  %s65, 16, %s3, [#allocation4]
    $region21: #{tpu_custom_call.1} parent=1 // pred_fallthru
      _
    // Predicated region
    $region22: #{tpu_custom_call.1} parent=1 // pred_check
      _
    $region23: #{tpu_custom_call.1} parent=1 // pred_check_branch
      %69 = sbr.rel (0) target = $region25
    $region24: #{tpu_custom_call.1} parent=1 // pred_region
      %70 = dma.done [#allocation4], 16
    $region25: #{tpu_custom_call.1} parent=1 // pred_fallthru
      _
    %71 = vsyncpa [#allocation4], 1
    %72 = vsyncpa [#allocation5], 1

</llo_original>
